<compile_context>
chip_gen: v6e
topology: v6e:2x2x1
jax: 0.10.0
libtpu: 0.0.40
codegen_flags: <defaults>
</compile_context>

<pallas_src>
import jax
import jax.numpy as jnp
from jax.experimental import pallas as pl
from jax.experimental.pallas import tpu as pltpu


def _conv3x3_prelu_kernel(alpha_ref, w_ref, b_ref, p_ref, o_ref):
    # alpha_ref: SMEM (1,) f32 PReLU slope
    # w_ref:     VMEM (C_out, K)    reshaped conv weights
    # b_ref:     VMEM (C_out, 1)    conv bias
    # p_ref:     VMEM (K, TM)       im2col patches for this (batch, M-tile)
    # o_ref:     VMEM (C_out, TM)   fused conv + bias + PReLU output
    y = jnp.dot(w_ref[...], p_ref[...], preferred_element_type=jnp.float32)
    y = y + b_ref[...]                       # lane-broadcast of (C_out, 1)
    a = alpha_ref[0]
    o_ref[...] = jnp.where(y >= 0.0, y, a * y).astype(o_ref.dtype)


def conv_block(x, weight, bias, prelu_alpha, *, tm_target=8192):
    """Pallas implementation of ConvBlock.forward (3x3 conv, padding=1, + PReLU).

    x:      (N, C_in, H, W)
    weight: (C_out, C_in, 3, 3)
    bias:   (C_out,)
    prelu_alpha: scalar PReLU slope (nn.PReLU() default: single parameter)
    Returns (N, C_out, H, W) with x.dtype.
    """
    N, C_in, H, W = x.shape
    C_out, C_in_w, KH, KW = weight.shape
    assert C_in == C_in_w and KH == 3 and KW == 3
    pad = 1

    M = H * W
    K = C_in * KH * KW

    # --- im2col (wrapper-side layout plumbing) -------------------------------
    xp = jnp.pad(x.astype(jnp.float32),
                 ((0, 0), (0, 0), (pad, pad), (pad, pad)))
    cols = [xp[:, :, ky:ky + H, kx:kx + W]          # each (N, C_in, H, W)
            for ky in range(KH) for kx in range(KW)]
    patches = jnp.stack(cols, axis=2).reshape(N, K, M)   # k = ci*9 + ky*3 + kx

    # --- lane-dense tiling over the spatial axis -----------------------------
    LANE = 128
    m_pad = pl.cdiv(M, LANE) * LANE
    TM = min(tm_target, m_pad)
    m_pad = pl.cdiv(m_pad, TM) * TM                  # guarantee full tile coverage
    if m_pad != M:
        patches = jnp.pad(patches, ((0, 0), (0, 0), (0, m_pad - M)))

    w2 = weight.reshape(C_out, K).astype(jnp.float32)
    b2 = bias.reshape(C_out, 1).astype(jnp.float32)
    alpha = jnp.asarray(prelu_alpha, dtype=jnp.float32).reshape(1)

    grid = (N, m_pad // TM)

    out = pl.pallas_call(
        _conv3x3_prelu_kernel,
        out_shape=jax.ShapeDtypeStruct((N, C_out, m_pad), x.dtype),
        grid=grid,
        in_specs=[
            pl.BlockSpec(memory_space=pltpu.SMEM),                   # alpha scalar
            pl.BlockSpec((C_out, K), lambda n, m: (0, 0)),           # weights (full)
            pl.BlockSpec((C_out, 1), lambda n, m: (0, 0)),           # bias (full)
            pl.BlockSpec((None, K, TM), lambda n, m: (n, 0, m)),     # patches tile
        ],
        out_specs=pl.BlockSpec((None, C_out, TM), lambda n, m: (n, 0, m)),
        compiler_params=pltpu.CompilerParams(
            dimension_semantics=("parallel", "parallel")),
    )(alpha, w2, b2, patches)

    if m_pad != M:
        out = out[:, :, :M]
    return out.reshape(N, C_out, H, W)


def _reference(x, weight, bias, alpha):
    y = jax.lax.conv_general_dilated(
        x, weight, window_strides=(1, 1), padding=((1, 1), (1, 1)),
        dimension_numbers=("NCHW", "OIHW", "NCHW"))
    y = y + bias[None, :, None, None]
    return jnp.where(y >= 0, y, alpha * y)


if __name__ == "__main__":
    key = jax.random.PRNGKey(0)
    k_x, k_w, k_b = jax.random.split(key, 3)

    N, C_in, H, W = 2, 4, 16, 16
    C_out = 8
    x = jax.random.normal(k_x, (N, C_in, H, W), dtype=jnp.float32)
    weight = jax.random.normal(k_w, (C_out, C_in, 3, 3), dtype=jnp.float32) * 0.1
    bias = jax.random.normal(k_b, (C_out,), dtype=jnp.float32) * 0.1
    alpha = jnp.float32(0.25)          # nn.PReLU() default init

    y = conv_block(x, weight, bias, alpha)
    jax.block_until_ready(y)

    y_ref = _reference(x, weight, bias, alpha)
    assert y.shape == (N, C_out, H, W)
    assert jnp.allclose(y, y_ref, atol=1e-2, rtol=1e-2), \
        float(jnp.max(jnp.abs(y - y_ref)))

    print("KERNEL_OK")
</pallas_src>

<mosaic_0001>
module attributes {stable_mosaic.version = 11 : i64} {
  func.func @_conv3x3_prelu_kernel(%arg0: i32, %arg1: i32, %arg2: memref<1xf32, #tpu.memory_space<smem>>, %arg3: memref<8x36xf32, #tpu.memory_space<vmem>>, %arg4: memref<8x1xf32, #tpu.memory_space<vmem>>, %arg5: memref<1x36x256xf32, #tpu.memory_space<vmem>>, %arg6: memref<1x8x256xf32, #tpu.memory_space<vmem>>) attributes {dimension_semantics = [#tpu.dimension_semantics<parallel>, #tpu.dimension_semantics<parallel>], iteration_bounds = array<i64: 2, 1>, scalar_prefetch = 0 : i64, scratch_operands = 0 : i64, tpu.core_type = #tpu.core_type<tc>, window_params = [{transform_indices = @transform_0, window_bounds = array<i64: 1>}, {pipeline_mode = #tpu.pipeline_mode<synchronous>, transform_indices = @transform_1, window_bounds = array<i64: 8, 36>}, {pipeline_mode = #tpu.pipeline_mode<synchronous>, transform_indices = @transform_2, window_bounds = array<i64: 8, 1>}, {transform_indices = @transform_3, window_bounds = array<i64: 1, 36, 256>}, {transform_indices = @transform_4, window_bounds = array<i64: 1, 8, 256>}]} {
    %c0 = arith.constant 0 : index
    %c0_0 = arith.constant 0 : index
    %0 = vector.load %arg3[%c0, %c0_0] : memref<8x36xf32, #tpu.memory_space<vmem>>, vector<8x36xf32>
    %c0_1 = arith.constant 0 : index
    %c0_2 = arith.constant 0 : index
    %c0_3 = arith.constant 0 : index
    %1 = vector.load %arg5[%c0_1, %c0_2, %c0_3] : memref<1x36x256xf32, #tpu.memory_space<vmem>>, vector<1x36x256xf32>
    %2 = vector.shape_cast %1 : vector<1x36x256xf32> to vector<36x256xf32>
    %cst = arith.constant dense<0.000000e+00> : vector<8x256xf32>
    %3 = tpu.matmul %0, %2, %cst {dimension_numbers = #tpu.dot_dimension_numbers<[1], [0], [0], [1], [0, 0, 1, 1], [], []>} : vector<8x36xf32>, vector<36x256xf32>, vector<8x256xf32> -> vector<8x256xf32>
    %c0_4 = arith.constant 0 : index
    %c0_5 = arith.constant 0 : index
    %4 = vector.load %arg4[%c0_4, %c0_5] : memref<8x1xf32, #tpu.memory_space<vmem>>, vector<8x1xf32>
    %5 = vector.broadcast %4 : vector<8x1xf32> to vector<8x256xf32>
    %6 = arith.addf %3, %5 : vector<8x256xf32>
    %c0_6 = arith.constant 0 : index
    %7 = memref.load %arg2[%c0_6] : memref<1xf32, #tpu.memory_space<smem>>
    %cst_7 = arith.constant 0.000000e+00 : f32
    %8 = vector.broadcast %cst_7 : f32 to vector<8x256xf32>
    %9 = arith.cmpf oge, %6, %8 : vector<8x256xf32>
    %10 = vector.broadcast %7 : f32 to vector<8x256xf32>
    %11 = arith.mulf %10, %6 : vector<8x256xf32>
    %12 = arith.select %9, %6, %11 : vector<8x256xi1>, vector<8x256xf32>
    %c0_8 = arith.constant 0 : index
    %c0_9 = arith.constant 0 : index
    %c0_10 = arith.constant 0 : index
    %13 = vector.load %arg6[%c0_8, %c0_9, %c0_10] : memref<1x8x256xf32, #tpu.memory_space<vmem>>, vector<1x8x256xf32>
    %14 = vector.shape_cast %13 : vector<1x8x256xf32> to vector<8x256xf32>
    %15 = vector.shape_cast %12 : vector<8x256xf32> to vector<1x8x256xf32>
    tpu.vector_store %arg6[%c0_8, %c0_9, %c0_10], %15 {strides = array<i32>} : memref<1x8x256xf32, #tpu.memory_space<vmem>>, vector<1x8x256xf32>,
    return
  }
  func.func @transform_0(%arg0: i32, %arg1: i32) -> i32 {
    %c0_i32 = arith.constant 0 : i32
    %c0_i32_0 = arith.constant 0 : i32
    return %c0_i32 : i32
  }
  func.func @transform_1(%arg0: i32, %arg1: i32) -> (i32, i32) {
    %c0_i32 = arith.constant 0 : i32
    %c0_i32_0 = arith.constant 0 : i32
    %c0_i32_1 = arith.constant 0 : i32
    return %c0_i32, %c0_i32_0 : i32, i32
  }
  func.func @transform_2(%arg0: i32, %arg1: i32) -> (i32, i32) {
    %c0_i32 = arith.constant 0 : i32
    %c0_i32_0 = arith.constant 0 : i32
    %c0_i32_1 = arith.constant 0 : i32
    return %c0_i32, %c0_i32_0 : i32, i32
  }
  func.func @transform_3(%arg0: i32, %arg1: i32) -> (i32, i32, i32) {
    %c0_i32 = arith.constant 0 : i32
    %c0_i32_0 = arith.constant 0 : i32
    return %arg0, %c0_i32, %arg1 : i32, i32, i32
  }
  func.func @transform_4(%arg0: i32, %arg1: i32) -> (i32, i32, i32) {
    %c0_i32 = arith.constant 0 : i32
    %c0_i32_0 = arith.constant 0 : i32
    return %arg0, %c0_i32, %arg1 : i32, i32, i32
  }
}

</mosaic_0001>

<llo_original>
// kernel: tpu_custom_call.1
$region0: #{tpu_custom_call.1}
  #allocation0 [shape = 'u32[]', space=smem, size = 0x4, offset = 0x4, fixed_abs, tag = 'smem constant byte address 0x4 - core index']
  #allocation1 [shape = 'u32[144,128]{1,0:T(1,128)}', space=vmem, size = 0x12000, scoped, tag = 'internal scratch']
  #allocation2 [shape = 'f32[1]{0:T(128)S(6)}', space=smem, size = 0x200, scoped, tag = 'scoped memory for tpu_custom_call.1']
  %s0 = inlined_call_operand.<no memory space> [shape: f32[1], index: 0, kind: input, shape index: {}]
  %s1 = inlined_call_operand.vmem [shape: f32[8,36], index: 1, kind: input, shape index: {}]
  %s2 = inlined_call_operand.vmem [shape: f32[8,1], index: 2, kind: input, shape index: {}]
  %s3 = inlined_call_operand.vmem [shape: f32[2,36,256], index: 3, kind: input, shape index: {}]
  %s4 = inlined_call_operand.hbm [shape: f32[2,8,256], index: 4, kind: output, shape index: {}]
  %s5 = sld [smem:[#allocation0]]
  $region49: #{tpu_custom_call.1} parent=0
    _
  %s7 = ssub.s32 1, %s5
  %s8 = scalar_select 0, %s7, %s5
  %9 = sst [smem:[#allocation2]] %s0
  $region1: #{tpu_custom_call.1} parent=0
    #allocation3 [shape = 'u8[16384]{0}', space=vmem, size = 0x4000, scoped, tag = 'output window, operand 0']
    #allocation4 [shape = 's32[2]{0}', space=sflag, size = 0x8, scoped, tag = 'scoped memory for tpu_custom_call.1']
    %10 = vsyncpa [#allocation4], 0
    %s11 = scalar_lea.sflag [#allocation4], 1
    %12 = vsyncpa %s11, 0
    loop: start=0, step=1, limit=4
    $region2: #{tpu_custom_call.1} parent=1 // loop_pre_header
      _
    $region3: #{tpu_custom_call.1} parent=1 // loop_header
      %s14 = sphi 0, %s18
      %p15 = scmp.ge.s32.totalorder %s14, 4
      %s21 = sphi 0, %s33
      %s22 = sphi 0, %s29
      %s23 = sphi 0, %s21
      %s24 = sphi 0, %s22
      %s25 = sphi 0, %s23
      %s26 = sphi 0, %s24
      %s34 = sphi 0, %s34
      %s36 = sphi 0, %s34
      %s37 = sphi 0, %s36
      %s51 = sphi 0, %s37
      %s55 = sphi 0, %s55
      %s57 = sphi 0, %s55
      %s58 = sphi 0, %s57
      %s72 = sphi 0, %s58
      %s76 = sphi 0, %s76
      %s78 = sphi 0, %s76
      %s79 = sphi 0, %s78
      %s93 = sphi 0, %s79
      %s101 = sphi 0, %s103
      %s104 = sphi 0, %s101
      %s105 = sphi 0, %s104
      %s121 = sphi 0, %s105
      %s129 = sphi 0, %s131
      %s132 = sphi 0, %s129
      %s133 = sphi 0, %s132
      %s149 = sphi 0, %s133
    $region4: #{tpu_custom_call.1} parent=1 // loop_header_branch
      %17 = sbr.rel (%p15) target = $region8
    $region5: #{tpu_custom_call.1} parent=1 // loop_body
      %s19 = ssub.s32 %s14, 1
      %s20 = ssub.s32 %s14, 2
      %s27 = sadd.s32 1, %s22
      %p28 = scmp.ge.s32.totalorder %s27, 1
      %s29 = scalar_select %p28, 0, %s27
      %s30 = sadd.s32 1, %s21
      %s31 = scalar_select %p28, %s30, %s21
      %p32 = scmp.ge.s32.totalorder %s31, 2
      %s33 = scalar_select %p32, 0, %s31
      %s35 = sadd.s32 %s34, 1
      %p38 = scmp.eq.s32.totalorder %s14, 1
      %p39 = scmp.ne.s32.totalorder %s34, %s36
      %p40 = scmp.eq.s32.totalorder %s14, 0
      %p41 = por %p39, %p40
      %p42 = scmp.ne.s32.totalorder %s34, %s36
      %p43 = scmp.eq.s32.totalorder %s19, 1
      %p44 = por %p42, %p43
      %p45 = scmp.ne.s32.totalorder %s36, %s37
      %p46 = scmp.eq.s32.totalorder %s19, 0
      %p47 = por %p45, %p46
      %p48 = scmp.ne.s32.totalorder %s36, %s37
      %p49 = scmp.eq.s32.totalorder %s20, 1
      %p50 = por %p48, %p49
      %p52 = scmp.ne.s32.totalorder %s37, %s51
      %p53 = scmp.eq.s32.totalorder %s20, 0
      %p54 = por %p52, %p53
      %s56 = sadd.s32 %s55, 1
      %p59 = scmp.eq.s32.totalorder %s14, 1
      %p60 = scmp.ne.s32.totalorder %s55, %s57
      %p61 = scmp.eq.s32.totalorder %s14, 0
      %p62 = por %p60, %p61
      %p63 = scmp.ne.s32.totalorder %s55, %s57
      %p64 = scmp.eq.s32.totalorder %s19, 1
      %p65 = por %p63, %p64
      %p66 = scmp.ne.s32.totalorder %s57, %s58
      %p67 = scmp.eq.s32.totalorder %s19, 0
      %p68 = por %p66, %p67
      %p69 = scmp.ne.s32.totalorder %s57, %s58
      %p70 = scmp.eq.s32.totalorder %s20, 1
      %p71 = por %p69, %p70
      %p73 = scmp.ne.s32.totalorder %s58, %s72
      %p74 = scmp.eq.s32.totalorder %s20, 0
      %p75 = por %p73, %p74
      %s77 = sadd.s32 %s76, 1
      %p80 = scmp.eq.s32.totalorder %s14, 1
      %p81 = scmp.ne.s32.totalorder %s76, %s78
      %p82 = scmp.eq.s32.totalorder %s14, 0
      %p83 = por %p81, %p82
      %p84 = scmp.ne.s32.totalorder %s76, %s78
      %p85 = scmp.eq.s32.totalorder %s19, 1
      %p86 = por %p84, %p85
      %p87 = scmp.ne.s32.totalorder %s78, %s79
      %p88 = scmp.eq.s32.totalorder %s19, 0
      %p89 = por %p87, %p88
      %p90 = scmp.ne.s32.totalorder %s78, %s79
      %p91 = scmp.eq.s32.totalorder %s20, 1
      %p92 = por %p90, %p91
      %p94 = scmp.ne.s32.totalorder %s79, %s93
      %p95 = scmp.eq.s32.totalorder %s20, 0
      %p96 = por %p94, %p95
      %s97 = ssub.s32 %s21, %s33
      %s98 = ssub.s32 %s22, %s29
      %s99 = sor.u32 %s97, %s98
      %p100 = scmp.eq.s32.totalorder %s99, 0
      %s102 = sadd.s32 %s101, 1
      %s103 = scalar_select %p100, %s101, %s102
      %p106 = pneg %p100
      %p107 = scmp.eq.s32.totalorder %s14, 1
      %p108 = por %p106, %p107
      %p109 = scmp.ne.s32.totalorder %s101, %s104
      %p110 = scmp.eq.s32.totalorder %s14, 0
      %p111 = por %p109, %p110
      %p112 = scmp.ne.s32.totalorder %s101, %s104
      %p113 = scmp.eq.s32.totalorder %s19, 1
      %p114 = por %p112, %p113
      %p115 = scmp.ne.s32.totalorder %s104, %s105
      %p116 = scmp.eq.s32.totalorder %s19, 0
      %p117 = por %p115, %p116
      %p118 = scmp.ne.s32.totalorder %s104, %s105
      %p119 = scmp.eq.s32.totalorder %s20, 1
      %p120 = por %p118, %p119
      %p122 = scmp.ne.s32.totalorder %s105, %s121
      %p123 = scmp.eq.s32.totalorder %s20, 0
      %p124 = por %p122, %p123
      %s125 = ssub.s32 %s21, %s33
      %s126 = ssub.s32 %s22, %s29
      %s127 = sor.u32 %s125, %s126
      %p128 = scmp.eq.s32.totalorder %s127, 0
      %s130 = sadd.s32 %s129, 1
      %s131 = scalar_select %p128, %s129, %s130
      %p134 = pneg %p128
      %p135 = scmp.eq.s32.totalorder %s14, 1
      %p136 = por %p134, %p135
      %p137 = scmp.ne.s32.totalorder %s129, %s132
      %p138 = scmp.eq.s32.totalorder %s14, 0
      %p139 = por %p137, %p138
      %p140 = scmp.ne.s32.totalorder %s129, %s132
      %p141 = scmp.eq.s32.totalorder %s19, 1
      %p142 = por %p140, %p141
      %p143 = scmp.ne.s32.totalorder %s132, %s133
      %p144 = scmp.eq.s32.totalorder %s19, 0
      %p145 = por %p143, %p144
      %p146 = scmp.ne.s32.totalorder %s132, %s133
      %p147 = scmp.eq.s32.totalorder %s20, 1
      %p148 = por %p146, %p147
      %p150 = scmp.ne.s32.totalorder %s133, %s149
      %p151 = scmp.eq.s32.totalorder %s20, 0
      %p152 = por %p150, %p151
      %p153 = scmp.le.s32.totalorder 1, %s14
      %p154 = scmp.lt.s32.totalorder %s14, 3
      %p155 = pnand %p153, %p154
      %p156 = pneg %p155
      // Predicated region
      $region9: #{tpu_custom_call.1} parent=5 // pred_check
        _
      $region10: #{tpu_custom_call.1} parent=5 // pred_check_branch
        %158 = sbr.rel (%p155) target = $region12
      $region11: #{tpu_custom_call.1} parent=5 // pred_region
        %s159 = ssub.s32 %s14, 1
        // Predicated region
        $region13: #{tpu_custom_call.1} parent=11 // pred_check
          %p160 = pneg %p47
        $region14: #{tpu_custom_call.1} parent=11 // pred_check_branch
          %162 = sbr.rel (%p160) target = $region16
        $region15: #{tpu_custom_call.1} parent=11 // pred_region
          _
        $region16: #{tpu_custom_call.1} parent=11 // pred_fallthru
          _
        // Predicated region
        $region17: #{tpu_custom_call.1} parent=11 // pred_check
          %p163 = pneg %p68
        $region18: #{tpu_custom_call.1} parent=11 // pred_check_branch
          %165 = sbr.rel (%p163) target = $region20
        $region19: #{tpu_custom_call.1} parent=11 // pred_region
          _
        $region20: #{tpu_custom_call.1} parent=11 // pred_fallthru
          _
        // Predicated region
        $region21: #{tpu_custom_call.1} parent=11 // pred_check
          %p166 = pneg %p89
        $region22: #{tpu_custom_call.1} parent=11 // pred_check_branch
          %168 = sbr.rel (%p166) target = $region24
        $region23: #{tpu_custom_call.1} parent=11 // pred_region
          _
        $region24: #{tpu_custom_call.1} parent=11 // pred_fallthru
          _
      $region12: #{tpu_custom_call.1} parent=5 // pred_fallthru
        _
      %p169 = scmp.lt.s32.totalorder %s14, 2
      // Predicated region
      $region25: #{tpu_custom_call.1} parent=5 // pred_check
        %p170 = pneg %p169
      $region26: #{tpu_custom_call.1} parent=5 // pred_check_branch
        %172 = sbr.rel (%p170) target = $region28
      $region27: #{tpu_custom_call.1} parent=5 // pred_region
        // Predicated region
        $region29: #{tpu_custom_call.1} parent=27 // pred_check
          %p173 = pneg %p111
        $region30: #{tpu_custom_call.1} parent=27 // pred_check_branch
          %175 = sbr.rel (%p173) target = $region32
        $region31: #{tpu_custom_call.1} parent=27 // pred_region
          %s176 = smul.u32 2, %s22
          %p177 = scmp.lt.s32.totalorder %s21, 1
          %s178 = scalar_select %p177, %s21, 1
          %p179 = scmp.lt.s32.totalorder %s176, 1
          %s180 = scalar_select %p179, %s176, 1
          %s181 = smul.addr %s178, 10
          %s182 = sadd.s32 %s180, %s181
          %s183 = smul.addr %s182, 8
          %s184 = scalar_lea.vmem %s3, %s183
          %s185 = smul.u32 2, %s22
        $region32: #{tpu_custom_call.1} parent=27 // pred_fallthru
          _
      $region28: #{tpu_custom_call.1} parent=5 // pred_fallthru
        _
      %p186 = scmp.le.s32.totalorder 1, %s14
      %p187 = scmp.lt.s32.totalorder %s14, 3
      %p188 = pnand %p186, %p187
      %p189 = pneg %p188
      // Predicated region
      $region33: #{tpu_custom_call.1} parent=5 // pred_check
        _
      $region34: #{tpu_custom_call.1} parent=5 // pred_check_branch
        %191 = sbr.rel (%p188) target = $region36
      $region35: #{tpu_custom_call.1} parent=5 // pred_region
        %s192 = ssub.s32 %s14, 1
        %p193 = pneg %p47
        %p194 = pneg %p44
        %p195 = pneg %p68
        %p196 = pneg %p65
        %p197 = pneg %p89
        %p198 = pneg %p86
        %s199 = smul.u32 2, %s24
        %p200 = scmp.lt.s32.totalorder %s23, 1
        %s201 = scalar_select %p200, %s23, 1
        %p202 = scmp.lt.s32.totalorder %s199, 1
        %s203 = scalar_select %p202, %s199, 1
        %s204 = smul.addr %s201, 10
        %s205 = sadd.s32 %s203, %s204
        %s206 = smul.addr %s205, 8
        %s207 = scalar_lea.vmem %s3, %s206
        %p208 = pneg %p117
        %p209 = pneg %p114
        %p210 = pneg %p145
        %p211 = pneg %p142
        %s212 = sand.u32 %s132, 1
        %s213 = scalar_lea.sflag [#allocation4], %s212
        %s214 = sand.u32 %s132, 1
        %s215 = smul.addr %s214, 16
        %s216 = scalar_lea.vmem [#allocation3], %s215
        %s217 = smul.u32 2, %s24
        %p218 = scmp.lt.s32.totalorder %s23, 1
        %s219 = scalar_select %p218, %s23, 1
        %p220 = scmp.lt.s32.totalorder %s217, 1
        %s221 = scalar_select %p220, %s217, 1
        %s222 = smul.addr %s219, 10
        %s223 = sadd.s32 %s221, %s222
        %s224 = smul.addr %s223, 8
        %s225 = scalar_lea.vmem %s3, %s224
        %s226 = smul.u32 2, %s24
        %s227 = smul.u32 2, %s24
        %v228 = vld [vmem:[%s1] sm:$0xff]
        %v229 = vld [vmem:[%s225] sm:$0xff]
        %v230 = vld [vmem:[%s225 + $0x8] sm:$0xff]
        %v231 = vld [vmem:[%s225 + $0x10] sm:$0xff]
        %v232 = vld [vmem:[%s225 + $0x18] sm:$0xff]
        %v233 = vld [vmem:[%s225 + $0x20] sm:$0xff]
        %v234 = vld [vmem:[%s225 + $0x28] sm:$0xff]
        %v235 = vld [vmem:[%s225 + $0x30] sm:$0xff]
        %v236 = vld [vmem:[%s225 + $0x38] sm:$0xff]
        %v237 = vld [vmem:[%s225 + $0x40] sm:$0xf]
        %v238 = vld [vmem:[%s225 + $0x48] sm:$0xf]
        %v239 = vld [vmem:[%s2] sm:$0xff]
        %241 = vset.pattern.permute.xlu0 0
        %242 = vperm.xlu0 %241, %v239
        %v243 = vpop.permute.xlu0 %242
        %vm245 = vcmask 293888
        %v247 = vsel %vm245, %v228, 0
        %vm249 = vcmask 1043456
        %v251 = vsel %vm249, %v237, 0
        %v254 = vsel %vm249, %v238, 0
        %256 = vmatprep.subr.mxu0 0.0
        %257 = vmatpush1.msra.mxu0 0.0
        %258 = vmatprep.subr.mxu0 0.0
        %259 = vmatpush1.msra.mxu0 0.0
        %260 = vmatprep.subr.mxu0 0.0
        %261 = vmatpush1.msra.mxu0 0.0
        %262 = vmatprep.subr.mxu0 0.0
        %263 = vmatpush1.msra.mxu0 0.0
        %264 = vmatprep.subr.mxu0 0.0
        %265 = vmatpush1.msra.mxu0 0.0
        %266 = vmatprep.subr.mxu0 0.0
        %267 = vmatpush1.msra.mxu0 0.0
        %268 = vmatprep.subr.mxu0 0.0
        %269 = vmatpush1.msra.mxu0 0.0
        %270 = vmatprep.subr.mxu0 0.0
        %271 = vmatpush1.msra.mxu0 0.0
        %272 = vmatprep.subr.mxu0 0.0
        %273 = vmatpush1.msra.mxu0 0.0
        %274 = vmatprep.subr.mxu0 0.0
        %275 = vmatpush1.msra.mxu0 0.0
        %276 = vmatprep.subr.mxu0 0.0
        %277 = vmatpush1.msra.mxu0 0.0
        %278 = vmatprep.subr.mxu0 %v254
        %279 = vmatpush1.msra.mxu0 %v251
        %280 = vmatprep.subr.mxu0 %v236
        %281 = vmatpush1.msra.mxu0 %v235
        %282 = vmatprep.subr.mxu0 %v234
        %283 = vmatpush1.msra.mxu0 %v233
        %284 = vmatprep.subr.mxu0 %v232
        %285 = vmatpush1.msra.mxu0 %v231
        %286 = vmatprep.subr.mxu0 %v230
        %287 = vmatpush1.msra.mxu0 %v229
        %288 = vmatprep.subr.mxu0 0.0
        %289 = vmatpush2.msra.mxu0 0.0
        %290 = vmatprep.subr.mxu0 0.0
        %291 = vmatpush2.msra.mxu0 0.0
        %292 = vmatprep.subr.mxu0 0.0
        %293 = vmatpush2.msra.mxu0 0.0
        %294 = vmatprep.subr.mxu0 0.0
        %295 = vmatpush2.msra.mxu0 0.0
        %296 = vmatprep.subr.mxu0 0.0
        %297 = vmatpush2.msra.mxu0 0.0
        %298 = vmatprep.subr.mxu0 0.0
        %299 = vmatpush2.msra.mxu0 0.0
        %300 = vmatprep.subr.mxu0 0.0
        %301 = vmatpush2.msra.mxu0 0.0
        %302 = vmatprep.subr.mxu0 0.0
        %303 = vmatpush2.msra.mxu0 0.0
        %304 = vmatprep.subr.mxu0 0.0
        %305 = vmatpush2.msra.mxu0 0.0
        %306 = vmatprep.subr.mxu0 0.0
        %307 = vmatpush2.msra.mxu0 0.0
        %308 = vmatprep.subr.mxu0 0.0
        %309 = vmatpush2.msra.mxu0 0.0
        %310 = vmatprep.subr.mxu0 0.0
        %311 = vmatpush2.msra.mxu0 0.0
        %312 = vmatprep.subr.mxu0 0.0
        %313 = vmatpush2.msra.mxu0 0.0
        %314 = vmatprep.subr.mxu0 0.0
        %315 = vmatpush2.msra.mxu0 0.0
        %316 = vmatprep.subr.mxu0 0.0
        %317 = vmatpush2.msra.mxu0 0.0
        %318 = vmatprep.subr.mxu0 0.0
        %319 = vmatpush2.msra.mxu0 0.0
        %320 = vmatprep.mubr.f32.mxu0 0.0
        %321 = vmatmul.mubr.f32.gmra.mxu0 %v247
        %v322 = vpop.f32.mrf.mxu0
        %v323 = vadd.f32 %v243, %v322
        %v324 = vpop.f32.mrf.mxu0
        %v325 = vadd.f32 %v243, %v324
        %326 = vdwg.mxu0
        %s327 = sld [smem:[#allocation2]]
        %vm328 = vcmp.ge.f32.partialorder %v323, 0.0
        %vm329 = vcmp.ge.f32.partialorder %v325, 0.0
        %v330 = vstv %s327
        %v331 = vmul.f32 %v330, %v323
        %v332 = vmul.f32 %v330, %v325
        %v333 = vsel %vm328, %v323, %v331
        %v334 = vsel %vm329, %v325, %v332
        %335 = vst [vmem:[%s216] sm:$0xff] %v333
        %336 = vst [vmem:[%s216 + $0x8] sm:$0xff] %v334
        %s337 = sand.u32 %s132, 1
        %s338 = scalar_lea.sflag [#allocation4], %s337
        %s339 = sand.u32 %s132, 1
        %s340 = smul.addr %s339, 16
        %s341 = scalar_lea.vmem [#allocation3], %s340
        // Predicated region
        $region37: #{tpu_custom_call.1} parent=35 // pred_check
          %p342 = pneg %p142
        $region38: #{tpu_custom_call.1} parent=35 // pred_check_branch
          %344 = sbr.rel (%p342) target = $region40
        $region39: #{tpu_custom_call.1} parent=35 // pred_region
          %s345 = smul.u32 2, %s24
          %s347 = ssub.s32 256, 256
          %348 = vsyncadd %s338, %s347
          %s349 = smul.addr %s23, 2
          %s350 = sadd.s32 %s345, %s349
          %s351 = smul.addr %s350, 128
          %s352 = scalar_lea.hbm %s4, %s351
          %s354 = sshll.u32 %s341, 4
          %s355 = int_to_ptr.vmem [resolvable:$true] %s354
          %357 = dma.vmem_to_hbm [thread:$0]  %s355, 256, %s352, %s338
        $region40: #{tpu_custom_call.1} parent=35 // pred_fallthru
          _
      $region36: #{tpu_custom_call.1} parent=5 // pred_fallthru
        _
      %p358 = scmp.le.s32.totalorder 2, %s14
      // Predicated region
      $region41: #{tpu_custom_call.1} parent=5 // pred_check
        %p359 = pneg %p358
      $region42: #{tpu_custom_call.1} parent=5 // pred_check_branch
        %361 = sbr.rel (%p359) target = $region44
      $region43: #{tpu_custom_call.1} parent=5 // pred_region
        %s362 = ssub.s32 %s14, 2
        // Predicated region
        $region45: #{tpu_custom_call.1} parent=43 // pred_check
          %p363 = pneg %p148
        $region46: #{tpu_custom_call.1} parent=43 // pred_check_branch
          %365 = sbr.rel (%p363) target = $region48
        $region47: #{tpu_custom_call.1} parent=43 // pred_region
          %s366 = sand.u32 %s133, 1
          %s367 = scalar_lea.sflag [#allocation4], %s366
          %s368 = sand.u32 %s133, 1
          %s369 = smul.addr %s368, 16
          %s370 = scalar_lea.vmem [#allocation3], %s369
          %371 = dma.done %s367, 256
        $region48: #{tpu_custom_call.1} parent=43 // pred_fallthru
          _
      $region44: #{tpu_custom_call.1} parent=5 // pred_fallthru
        _
    $region6: #{tpu_custom_call.1} parent=1 // loop_footer
      %s18 = sadd.s32 1, %s14
    $region7: #{tpu_custom_call.1} parent=1 // loop_footer_branch
      %13 = sbr.rel target = $region3
    $region8: #{tpu_custom_call.1} parent=1 // loop_exit
      _
    %372 = vsyncpa [#allocation4], 1
    %s373 = scalar_lea.sflag [#allocation4], 1
    %374 = vsyncpa %s373, 1

</llo_original>
